<compile_context>
chip_gen: v6e
topology: v6e:2x2x1
jax: 0.10.0
libtpu: 0.0.40
codegen_flags: <defaults>
</compile_context>

<pallas_src>
import math

import jax
import jax.numpy as jnp
from jax import lax
from jax.experimental import pallas as pl
from jax.experimental.pallas import tpu as pltpu


NEG_SLOPE = 0.2                      # SAS_para.act == SAC_para.act == 'lrelu'

_AX_U, _AX_V, _AX_H, _AX_W = 0, 1, 2, 3
# (conv "height" axis, conv "width" axis) of each stage, in module order.
_STAGE_AXES = ((_AX_H, _AX_W),       # spaconv over (h, w)
               (_AX_U, _AX_V),       # angconv over (U, V)
               (_AX_U, _AX_H),       # verconv over (U, h)
               (_AX_V, _AX_W))       # horconv over (V, w)
_STAGE_NAMES = ("spaconv", "angconv", "verconv", "horconv")

_ROLL_SIGN = None


def _pltpu_roll_sign():
    """+1 if pltpu.roll(x, s, axis) == jnp.roll(x, s, axis), else -1.

    Probed once on the device with a tiny kernel so the tap-shift direction is
    guaranteed correct regardless of the rotate convention."""
    global _ROLL_SIGN
    if _ROLL_SIGN is None:
        xp = jnp.arange(8 * 128, dtype=jnp.float32).reshape(8, 128)

        def probe(x_ref, o_ref):
            o_ref[...] = pltpu.roll(x_ref[...], shift=1, axis=1)

        y = pl.pallas_call(probe, out_shape=jax.ShapeDtypeStruct(xp.shape, xp.dtype))(xp)
        if bool(jnp.all(y == jnp.roll(xp, 1, axis=1))):
            _ROLL_SIGN = 1
        elif bool(jnp.all(y == jnp.roll(xp, -1, axis=1))):
            _ROLL_SIGN = -1
        else:
            raise RuntimeError("unexpected pltpu.roll semantics")
    return _ROLL_SIGN


def _vmem_limit_bytes():
    """Per-generation scoped-VMEM limit: ~3/4 of physical, capped (v7x has only 64 MiB)."""
    cap = 64 * 1024 * 1024
    try:
        cap = int(getattr(pltpu.get_tpu_info(), "vmem_capacity_bytes", cap))
    except Exception:
        pass
    return int(min(cap * 3 // 4, 100 * 1024 * 1024))


def _make_fused_kernel(C, sizes, residual):
    """All four 3x3 convs + LeakyReLU(0.2) (+ residual) on one channel-first (C, R) slab.

    R = U*V*h*w is fused into the lane axis; conv taps are lane rolls by the axis stride
    with the out-of-range border coordinates masked to zero ('same' padding in-kernel)."""
    U, V, h, w = sizes
    R = U * V * h * w
    strides = (V * h * w, h * w, w, 1)
    roll_sign = _pltpu_roll_sign()

    def kernel(x_ref, w_ref, b_ref, o_ref):
        # Border masks (1, R), one pair per conv axis, hoisted out of the tap loops.
        lane = lax.broadcasted_iota(jnp.int32, (1, R), 1)
        masks = {}
        for ax in range(4):
            coord = (lane // strides[ax]) % sizes[ax]
            masks[(ax, 1)] = coord != (sizes[ax] - 1)
            masks[(ax, -1)] = coord != 0

        def shift(v, ax, d):
            # u[:, p] = v[:, p + d*stride(ax)] if the ax-coordinate stays in range, else 0.
            if d == 0:
                return v
            amount = (roll_sign * (-d) * strides[ax]) % R
            rolled = pltpu.roll(v, shift=amount, axis=1)
            return jnp.where(masks[(ax, d)], rolled, 0.0)

        def conv(act, si, ax_a, ax_b):
            # 3x3 'same' conv + bias + LeakyReLU(0.2) over (ax_a, ax_b); act: (C, R) f32.
            acc = jnp.zeros((C, R), jnp.float32)
            for ka, sa in enumerate((-1, 0, 1)):        # weight dim 0 <-> ax_a
                xa = shift(act, ax_a, sa)
                for kb, sb in enumerate((-1, 0, 1)):    # weight dim 1 <-> ax_b
                    xab = shift(xa, ax_b, sb)
                    acc = acc + jnp.dot(                # (Cout,Cin)@(Cin,R), bf16 -> f32 acc
                        w_ref[si, ka, kb], xab.astype(jnp.bfloat16),
                        preferred_element_type=jnp.float32)
            acc = acc + b_ref[si]                       # (C, 1) bias, f32
            return jnp.maximum(acc, NEG_SLOPE * acc)    # LeakyReLU(0.2), single vmax

        a = x_ref[0]                                    # (C, R) channel-first slab
        for si, (ax_a, ax_b) in enumerate(_STAGE_AXES):
            a = conv(a, si, ax_a, ax_b)
        if residual:
            a = a + x_ref[0]                            # fused residual (re-read VMEM block)
        o_ref[0] = a.astype(o_ref.dtype)

    return kernel


def sav_concat_forward(x, params, residual_connection=True):
    """x: (N, c, U, V, h, w) -- same axis convention as the torch module."""
    N, c, U, V, h, w = x.shape
    R = U * V * h * w

    # MXU-facing weights: HWIO (3,3,cin,cout) -> per-tap (cout,cin), bf16, stacked per stage.
    w_all = jnp.stack([params[n]["w"] for n in _STAGE_NAMES])            # (4,3,3,cin,cout)
    w_all = jnp.transpose(w_all, (0, 1, 2, 4, 3)).astype(jnp.bfloat16)   # (4,3,3,cout,cin)
    b_all = jnp.stack([params[n]["b"] for n in _STAGE_NAMES]
                      ).astype(jnp.float32)[..., None]                   # (4, c, 1)

    x_r = x.reshape(N, c, R)        # free fuse of the row-major (U, V, h, w) index

    kernel = _make_fused_kernel(c, (U, V, h, w), residual_connection)
    out_r = pl.pallas_call(
        kernel,
        out_shape=jax.ShapeDtypeStruct((N, c, R), x.dtype),
        grid_spec=pltpu.PrefetchScalarGridSpec(
            num_scalar_prefetch=0,
            grid=(N,),
            in_specs=[
                pl.BlockSpec((1, c, R), lambda n: (n, 0, 0)),
                pl.BlockSpec((4, 3, 3, c, c), lambda n: (0, 0, 0, 0, 0)),
                pl.BlockSpec((4, c, 1), lambda n: (0, 0, 0)),
            ],
            out_specs=pl.BlockSpec((1, c, R), lambda n: (n, 0, 0)),
        ),
        compiler_params=pltpu.CompilerParams(
            dimension_semantics=("parallel",),
            vmem_limit_bytes=_vmem_limit_bytes()),
    )(x_r, w_all, b_all)
    return out_r.reshape(N, c, U, V, h, w)


def make_params(key, fn, dtype=jnp.float32):
    """kaiming_normal_(a=0.2, 'fan_in', 'leaky_relu') weights in (kh,kw,cin,cout) layout;
    bias = 0 (torch: init.constant_(bias, 0.0)) but kept as a real, learnable input."""
    keys = jax.random.split(key, len(_STAGE_NAMES))
    gain = math.sqrt(2.0 / (1.0 + NEG_SLOPE ** 2))
    std = gain / math.sqrt(fn * 3 * 3)
    return {
        name: {"w": std * jax.random.normal(k, (3, 3, fn, fn), dtype=dtype),
               "b": jnp.zeros((fn,), dtype=dtype)}
        for name, k in zip(_STAGE_NAMES, keys)
    }


# ---- pure-XLA mirror of the torch module (for end-to-end validation) ----
def _ref_forward(x, params, residual_connection=True):
    N, c, U, V, h, w = x.shape

    def conv(t, p):
        out = lax.conv_general_dilated(
            t, p["w"], window_strides=(1, 1), padding="SAME",
            dimension_numbers=("NHWC", "HWIO", "NHWC"),
            precision=lax.Precision.HIGHEST) + p["b"]
        return jnp.where(out >= 0.0, out, NEG_SLOPE * out)

    t = jnp.transpose(x, (0, 2, 3, 4, 5, 1)).reshape(N * U * V, h, w, c)
    t = conv(t, params["spaconv"])                                     # (h, w)
    t = jnp.transpose(t.reshape(N, U, V, h, w, c),
                      (0, 3, 4, 1, 2, 5)).reshape(N * h * w, U, V, c)
    t = conv(t, params["angconv"])                                     # (U, V)
    t = jnp.transpose(t.reshape(N, h, w, U, V, c),
                      (0, 4, 2, 3, 1, 5)).reshape(N * V * w, U, h, c)
    t = conv(t, params["verconv"])                                     # (U, h)
    t = jnp.transpose(t.reshape(N, V, w, U, h, c),
                      (0, 3, 4, 1, 2, 5)).reshape(N * U * h, V, w, c)
    t = conv(t, params["horconv"])                                     # (V, w)
    out = jnp.transpose(t.reshape(N, U, h, V, w, c), (0, 5, 1, 3, 2, 4))
    if residual_connection:
        out = out + x
    return out


if __name__ == "__main__":
    key = jax.random.PRNGKey(0)
    kx, kp = jax.random.split(key)

    # Small shapes consistent with the module: (N, c, U, V, h, w), c == fn.
    # U*V*h*w = 1024 (a multiple of 128) keeps every lane roll / DMA / store fully
    # lane-aligned; c is a multiple of 8 for the sublane dim of the (c, R) slabs.
    N, c, U, V, h, w = 2, 32, 4, 4, 8, 8
    x = jax.random.normal(kx, (N, c, U, V, h, w), dtype=jnp.float32)
    params = make_params(kp, c)

    _pltpu_roll_sign()   # one-time device probe, run before (and cached for) the jitted trace

    out = jax.block_until_ready(jax.jit(sav_concat_forward)(x, params))
    assert out.shape == (N, c, U, V, h, w)

    # end-to-end validation (all four conv views + residual) against the f32 XLA mirror;
    # the kernel uses bf16 MXU operands with f32 accumulation, hence the 3e-2 tolerance.
    ref = jax.block_until_ready(jax.jit(_ref_forward)(x, params))
    max_err = float(jnp.max(jnp.abs(out - ref)))
    assert jnp.allclose(out, ref, atol=3e-2, rtol=3e-2), f"mismatch, max abs err={max_err}"

    print("KERNEL_OK")
</pallas_src>

<mosaic_0001>
module attributes {stable_mosaic.version = 11 : i64} {
  func.func @probe(%arg0: memref<8x128xf32, #tpu.memory_space<vmem>>, %arg1: memref<8x128xf32, #tpu.memory_space<vmem>>) attributes {dimension_semantics = [], scalar_prefetch = 0 : i64, scratch_operands = 0 : i64, tpu.core_type = #tpu.core_type<tc>} {
    %c0 = arith.constant 0 : index
    %c0_0 = arith.constant 0 : index
    %0 = vector.load %arg0[%c0, %c0_0] : memref<8x128xf32, #tpu.memory_space<vmem>>, vector<8x128xf32>
    %c1_i32 = arith.constant 1 : i32
    %1 = tpu.dynamic_rotate %0 by %c1_i32 dim 1 : vector<8x128xf32>, i32 -> vector<8x128xf32>
    %c0_1 = arith.constant 0 : index
    %c0_2 = arith.constant 0 : index
    %2 = vector.load %arg1[%c0_1, %c0_2] : memref<8x128xf32, #tpu.memory_space<vmem>>, vector<8x128xf32>
    tpu.vector_store %arg1[%c0_1, %c0_2], %1 {strides = array<i32>} : memref<8x128xf32, #tpu.memory_space<vmem>>, vector<8x128xf32>,
    return
  }
}

</mosaic_0001>

<llo_original>
// kernel: tpu_custom_call.1
$region0: #{tpu_custom_call.1}
  #allocation0 [shape = 'u32[]', space=smem, size = 0x4, offset = 0x4, fixed_abs, tag = 'smem constant byte address 0x4 - core index']
  #allocation1 [shape = 'u32[144,128]{1,0:T(1,128)}', space=vmem, size = 0x12000, scoped, tag = 'internal scratch']
  %s0 = inlined_call_operand.hbm [shape: f32[8,128], index: 0, kind: input, shape index: {}]
  %s1 = inlined_call_operand.hbm [shape: f32[8,128], index: 1, kind: output, shape index: {}]
  %s2 = sld [smem:[#allocation0]]
  $region18: #{tpu_custom_call.1} parent=0
    _
  %s4 = ssub.s32 1, %s2
  %s5 = scalar_select 0, %s4, %s2
  $region1: #{tpu_custom_call.1} parent=0
    #allocation2 [shape = 'u8[4096]{0}', space=vmem, size = 0x1000, scoped, tag = 'input window, operand 0, single buffered']
    #allocation3 [shape = 's32[1]{0}', space=sflag, size = 0x4, scoped, tag = 'scoped memory for tpu_custom_call.1']
    #allocation4 [shape = 's32[1]{0}', space=sflag, size = 0x4, scoped, tag = 'scoped memory for tpu_custom_call.1']
    #allocation5 [shape = 'u8[4096]{0}', space=vmem, size = 0x1000, scoped, tag = 'output window, operand 0, single buffered']
    %6 = vsyncpa [#allocation3], 0
    %7 = vsyncpa [#allocation4], 0
    // Predicated region
    $region2: #{tpu_custom_call.1} parent=1 // pred_check
      _
    $region3: #{tpu_custom_call.1} parent=1 // pred_check_branch
      %9 = sbr.rel (0) target = $region5
    $region4: #{tpu_custom_call.1} parent=1 // pred_region
      %s11 = ssub.s32 128, 128
      %12 = vsyncadd [#allocation3], %s11
      %s14 = sshll.u32 [#allocation2], 4
      %s15 = int_to_ptr.vmem [resolvable:$true] %s14
      %17 = dma.hbm_to_vmem [thread:$0]  %s0, 128, %s15, [#allocation3]
    $region5: #{tpu_custom_call.1} parent=1 // pred_fallthru
      _
    // Predicated region
    $region6: #{tpu_custom_call.1} parent=1 // pred_check
      _
    $region7: #{tpu_custom_call.1} parent=1 // pred_check_branch
      %19 = sbr.rel (0) target = $region9
    $region8: #{tpu_custom_call.1} parent=1 // pred_region
      %20 = dma.done [#allocation3], 128
    $region9: #{tpu_custom_call.1} parent=1 // pred_fallthru
      _
    %v21 = vld [vmem:[#allocation2] sm:$0xff]
    %22 = vrot.lane.b32.xlu0 %v21, 1
    %v23 = vpop.permute.xlu0 %22
    %24 = vst [vmem:[#allocation5] sm:$0xff] %v23
    // Predicated region
    $region10: #{tpu_custom_call.1} parent=1 // pred_check
      _
    $region11: #{tpu_custom_call.1} parent=1 // pred_check_branch
      %26 = sbr.rel (0) target = $region13
    $region12: #{tpu_custom_call.1} parent=1 // pred_region
      %s28 = ssub.s32 128, 128
      %29 = vsyncadd [#allocation4], %s28
      %s31 = sshll.u32 [#allocation5], 4
      %s32 = int_to_ptr.vmem [resolvable:$true] %s31
      %34 = dma.vmem_to_hbm [thread:$0]  %s32, 128, %s1, [#allocation4]
    $region13: #{tpu_custom_call.1} parent=1 // pred_fallthru
      _
    // Predicated region
    $region14: #{tpu_custom_call.1} parent=1 // pred_check
      _
    $region15: #{tpu_custom_call.1} parent=1 // pred_check_branch
      %36 = sbr.rel (0) target = $region17
    $region16: #{tpu_custom_call.1} parent=1 // pred_region
      %37 = dma.done [#allocation4], 128
    $region17: #{tpu_custom_call.1} parent=1 // pred_fallthru
      _
    %38 = vsyncpa [#allocation3], 1
    %39 = vsyncpa [#allocation4], 1

</llo_original>
